<compile_context>
chip_gen: v5e
topology: v5e:2x2
jax: 0.10.0
libtpu: 0.0.40
codegen_flags: <defaults>
</compile_context>

<pallas_src>
import functools

import jax
import jax.numpy as jnp
from jax.experimental import pallas as pl
from jax.experimental.pallas import tpu as pltpu


EPS = 1e-5
NEG_SLOPE = 0.01


def _conv_stats_kernel(p_ref, w_ref, y_ref, sum_ref, ssq_ref):
    """Pass 1: conv-as-matmul with lane-dense (C, P) tiles + running stats.

    p_ref:   (1, K, PT)  im2col patches for one sample / P-tile (matmul dtype)
    w_ref:   (C, K)      conv weight (matmul dtype), resident across the grid
    y_ref:   (1, C, PT)  conv output tile (f32), spatial dim in lanes
    sum_ref: (1, C, 1)   per-(n, c) running sum (f32; resident across P tiles)
    ssq_ref: (1, C, 1)   per-(n, c) running sum of squares (f32)
    """
    # MXU: (C, K) @ (K, PT) -> (C, PT); PT in lanes -> unmasked lane-dense store.
    y = jnp.dot(w_ref[...], p_ref[0], preferred_element_type=jnp.float32)
    y_ref[0] = y

    @pl.when(pl.program_id(1) == 0)
    def _():
        sum_ref[...] = jnp.zeros_like(sum_ref)
        ssq_ref[...] = jnp.zeros_like(ssq_ref)

    sum_ref[0] += jnp.sum(y, axis=1, keepdims=True)      # (C, 1)
    ssq_ref[0] += jnp.sum(y * y, axis=1, keepdims=True)  # (C, 1)


def _norm_act_kernel(y_ref, scale_ref, shift_ref, o_ref):
    """Pass 2: fused InstanceNorm (pre-folded affine) + LeakyReLU.

    y_ref:     (1, C, PT) f32 conv output tile
    scale_ref: (1, C, 1)  gamma * rsqrt(var + eps)
    shift_ref: (1, C, 1)  beta - mean * scale
    o_ref:     (1, C, PT) final output tile
    """
    z = y_ref[0] * scale_ref[0] + shift_ref[0]            # (C, PT)
    o_ref[0] = jnp.where(z >= 0, z, NEG_SLOPE * z).astype(o_ref.dtype)


def _im2col_kcp(x, k, s, p):
    """x: (N, C, H, W) -> patches (N, C*k*k, OH*OW); K ordered (c, kh, kw).

    Matches PyTorch weight layout (Cout, Cin, kh, kw).reshape(Cout, Cin*k*k).
    No transpose is materialized: the (K, P) layout feeds the kernel directly.
    """
    n, c, h, w = x.shape
    xp = jnp.pad(x, ((0, 0), (0, 0), (p, p), (p, p)))
    oh = (h + 2 * p - k) // s + 1
    ow = (w + 2 * p - k) // s + 1
    slabs = []
    for kh in range(k):
        for kw in range(k):
            slabs.append(xp[:, :, kh:kh + s * oh:s, kw:kw + s * ow:s])
    pat = jnp.stack(slabs, axis=2)            # (N, C, k*k, OH, OW)
    pat = pat.reshape(n, c * k * k, oh * ow)  # (N, K, P)
    return pat, oh, ow


def _choose_p_tile(p, max_tile=1024):
    """Pick a spatial tile: full P if small, else a multiple-of-128 divisor."""
    if p <= max_tile:
        return p
    for t in range(max_tile, 127, -128):
        if p % t == 0:
            return t
    return p  # no friendly divisor: fall back to the full spatial extent


@functools.partial(
    jax.jit,
    static_argnames=("kernel_size", "stride", "padding", "matmul_dtype"))
def downsampling_block(x, weight, bias, gamma, beta,
                       kernel_size=4, stride=2, padding=1,
                       matmul_dtype=jnp.bfloat16):
    """x: (N, Cin, H, W) NCHW; weight: (Cout, Cin, k, k) (PyTorch layout)."""
    # Conv bias is exactly cancelled by InstanceNorm's mean subtraction (same
    # is true of the PyTorch module), so it is not shipped to the kernel.
    del bias
    n, cin, _, _ = x.shape
    cout = weight.shape[0]
    k = kernel_size

    patches, oh, ow = _im2col_kcp(x, k, stride, padding)   # (N, K, P)
    p_dim = oh * ow
    k_dim = cin * k * k
    pt = _choose_p_tile(p_dim)
    num_pt = p_dim // pt

    patches = patches.astype(matmul_dtype)
    w2d = weight.reshape(cout, k_dim).astype(matmul_dtype)  # (Cout, K)

    # Scoped-VMEM budget: double-buffered inputs + output tiles, with headroom,
    # capped at 64 MiB (v7x physical VMEM per TC).
    mm_bytes = jnp.dtype(matmul_dtype).itemsize
    est = (2 * k_dim * pt * mm_bytes        # patch tile (double-buffered)
           + 2 * cout * k_dim * mm_bytes    # weight tile
           + 2 * cout * pt * 4              # conv output tile (f32)
           + 8 * cout * 4)                  # stats blocks
    vmem_limit = int(min(max(2 * est, 32 * 1024 * 1024), 64 * 1024 * 1024))

    # ---- Pass 1: conv (MXU) + per-(n, c) sum / sum-of-squares accumulation.
    y, s1, s2 = pl.pallas_call(
        _conv_stats_kernel,
        out_shape=(
            jax.ShapeDtypeStruct((n, cout, p_dim), jnp.float32),
            jax.ShapeDtypeStruct((n, cout, 1), jnp.float32),
            jax.ShapeDtypeStruct((n, cout, 1), jnp.float32),
        ),
        grid_spec=pltpu.PrefetchScalarGridSpec(
            num_scalar_prefetch=0,
            grid=(n, num_pt),
            in_specs=[
                pl.BlockSpec((1, k_dim, pt), lambda i, j: (i, 0, j)),
                pl.BlockSpec((cout, k_dim), lambda i, j: (0, 0)),
            ],
            out_specs=[
                pl.BlockSpec((1, cout, pt), lambda i, j: (i, 0, j)),
                pl.BlockSpec((1, cout, 1), lambda i, j: (i, 0, 0)),
                pl.BlockSpec((1, cout, 1), lambda i, j: (i, 0, 0)),
            ],
        ),
        compiler_params=pltpu.CompilerParams(
            dimension_semantics=("parallel", "arbitrary"),
            vmem_limit_bytes=vmem_limit),
    )(patches, w2d)

    # ---- Tiny (N, C, 1) glue: fold mean/var + affine into one scale/shift.
    inv_p = 1.0 / p_dim
    mean = s1 * inv_p
    var = jnp.maximum(s2 * inv_p - mean * mean, 0.0)  # biased variance
    scale = gamma.reshape(1, cout, 1) * jax.lax.rsqrt(var + EPS)  # (N, C, 1)
    shift = beta.reshape(1, cout, 1) - mean * scale               # (N, C, 1)

    # ---- Pass 2: fused normalize + LeakyReLU over lane-dense (C, P) tiles.
    out_flat = pl.pallas_call(
        _norm_act_kernel,
        out_shape=jax.ShapeDtypeStruct((n, cout, p_dim), x.dtype),
        grid_spec=pltpu.PrefetchScalarGridSpec(
            num_scalar_prefetch=0,
            grid=(n, num_pt),
            in_specs=[
                pl.BlockSpec((1, cout, pt), lambda i, j: (i, 0, j)),
                pl.BlockSpec((1, cout, 1), lambda i, j: (i, 0, 0)),
                pl.BlockSpec((1, cout, 1), lambda i, j: (i, 0, 0)),
            ],
            out_specs=pl.BlockSpec((1, cout, pt), lambda i, j: (i, 0, j)),
        ),
        compiler_params=pltpu.CompilerParams(
            dimension_semantics=("parallel", "parallel"),
            vmem_limit_bytes=vmem_limit),
    )(y, scale, shift)

    # (N, Cout, OH*OW) -> NCHW directly; no transpose needed.
    return out_flat.reshape(n, cout, oh, ow)


def _reference(x, weight, bias, gamma, beta, kernel_size=4, stride=2, padding=1):
    """Pure-JAX reference matching Conv2d + InstanceNorm2d(train) + LeakyReLU."""
    y = jax.lax.conv_general_dilated(
        x, weight, window_strides=(stride, stride),
        padding=[(padding, padding), (padding, padding)],
        dimension_numbers=("NCHW", "OIHW", "NCHW"))
    y = y + bias.reshape(1, -1, 1, 1)
    mean = jnp.mean(y, axis=(2, 3), keepdims=True)
    var = jnp.mean((y - mean) ** 2, axis=(2, 3), keepdims=True)
    y = (y - mean) * jax.lax.rsqrt(var + EPS)
    y = y * gamma.reshape(1, -1, 1, 1) + beta.reshape(1, -1, 1, 1)
    return jnp.where(y >= 0, y, NEG_SLOPE * y)


if __name__ == "__main__":
    key = jax.random.PRNGKey(0)
    k_x, k_w, k_b, k_g, k_be = jax.random.split(key, 5)

    N, CIN, COUT, H, W = 2, 4, 8, 16, 16
    K = 4

    x = jax.random.normal(k_x, (N, CIN, H, W), dtype=jnp.float32)
    weight = jax.random.normal(k_w, (COUT, CIN, K, K), dtype=jnp.float32) * 0.1
    bias = jax.random.normal(k_b, (COUT,), dtype=jnp.float32) * 0.1
    gamma = 1.0 + 0.1 * jax.random.normal(k_g, (COUT,), dtype=jnp.float32)
    beta = 0.1 * jax.random.normal(k_be, (COUT,), dtype=jnp.float32)

    ref = jax.block_until_ready(_reference(x, weight, bias, gamma, beta))

    # Strict correctness check with f32 matmul operands.
    out_f32 = jax.block_until_ready(
        downsampling_block(x, weight, bias, gamma, beta,
                           matmul_dtype=jnp.float32))
    assert out_f32.shape == (N, COUT, H // 2, W // 2), out_f32.shape
    assert jnp.allclose(out_f32, ref, atol=1e-4, rtol=1e-4), float(
        jnp.max(jnp.abs(out_f32 - ref)))

    # Default fast path: bf16 MXU operands (looser tolerance vs f32 reference).
    out_bf16 = jax.block_until_ready(
        downsampling_block(x, weight, bias, gamma, beta))
    assert out_bf16.shape == (N, COUT, H // 2, W // 2), out_bf16.shape
    assert jnp.allclose(out_bf16, ref, atol=1e-1, rtol=1e-1), float(
        jnp.max(jnp.abs(out_bf16 - ref)))

    print("KERNEL_OK")
</pallas_src>

<mosaic_0001>
module attributes {stable_mosaic.version = 11 : i64} {
  func.func @_norm_act_kernel(%arg0: i32, %arg1: i32, %arg2: memref<1x8x64xf32, #tpu.memory_space<vmem>>, %arg3: memref<1x8x1xf32, #tpu.memory_space<vmem>>, %arg4: memref<1x8x1xf32, #tpu.memory_space<vmem>>, %arg5: memref<1x8x64xf32, #tpu.memory_space<vmem>>) attributes {dimension_semantics = [#tpu.dimension_semantics<parallel>, #tpu.dimension_semantics<parallel>], iteration_bounds = array<i64: 2, 1>, scalar_prefetch = 0 : i64, scratch_operands = 0 : i64, tpu.core_type = #tpu.core_type<tc>, window_params = [{transform_indices = @transform_0, window_bounds = array<i64: 1, 8, 64>}, {transform_indices = @transform_1, window_bounds = array<i64: 1, 8, 1>}, {transform_indices = @transform_2, window_bounds = array<i64: 1, 8, 1>}, {transform_indices = @transform_3, window_bounds = array<i64: 1, 8, 64>}]} {
    %c0 = arith.constant 0 : index
    %c0_0 = arith.constant 0 : index
    %c0_1 = arith.constant 0 : index
    %0 = vector.load %arg2[%c0, %c0_0, %c0_1] : memref<1x8x64xf32, #tpu.memory_space<vmem>>, vector<1x8x64xf32>
    %1 = vector.shape_cast %0 : vector<1x8x64xf32> to vector<8x64xf32>
    %c0_2 = arith.constant 0 : index
    %c0_3 = arith.constant 0 : index
    %c0_4 = arith.constant 0 : index
    %2 = vector.load %arg3[%c0_2, %c0_3, %c0_4] : memref<1x8x1xf32, #tpu.memory_space<vmem>>, vector<1x8x1xf32>
    %3 = vector.shape_cast %2 : vector<1x8x1xf32> to vector<8x1xf32>
    %4 = vector.broadcast %3 : vector<8x1xf32> to vector<8x64xf32>
    %5 = arith.mulf %1, %4 : vector<8x64xf32>
    %c0_5 = arith.constant 0 : index
    %c0_6 = arith.constant 0 : index
    %c0_7 = arith.constant 0 : index
    %6 = vector.load %arg4[%c0_5, %c0_6, %c0_7] : memref<1x8x1xf32, #tpu.memory_space<vmem>>, vector<1x8x1xf32>
    %7 = vector.shape_cast %6 : vector<1x8x1xf32> to vector<8x1xf32>
    %8 = vector.broadcast %7 : vector<8x1xf32> to vector<8x64xf32>
    %9 = arith.addf %5, %8 : vector<8x64xf32>
    %cst = arith.constant 0.000000e+00 : f32
    %10 = vector.broadcast %cst : f32 to vector<8x64xf32>
    %11 = arith.cmpf oge, %9, %10 : vector<8x64xf32>
    %cst_8 = arith.constant 0.00999999977 : f32
    %12 = vector.broadcast %cst_8 : f32 to vector<8x64xf32>
    %13 = arith.mulf %12, %9 : vector<8x64xf32>
    %14 = arith.select %11, %9, %13 : vector<8x64xi1>, vector<8x64xf32>
    %c0_9 = arith.constant 0 : index
    %c0_10 = arith.constant 0 : index
    %c0_11 = arith.constant 0 : index
    %15 = vector.load %arg5[%c0_9, %c0_10, %c0_11] : memref<1x8x64xf32, #tpu.memory_space<vmem>>, vector<1x8x64xf32>
    %16 = vector.shape_cast %15 : vector<1x8x64xf32> to vector<8x64xf32>
    %17 = vector.shape_cast %14 : vector<8x64xf32> to vector<1x8x64xf32>
    tpu.vector_store %arg5[%c0_9, %c0_10, %c0_11], %17 {strides = array<i32>} : memref<1x8x64xf32, #tpu.memory_space<vmem>>, vector<1x8x64xf32>,
    return
  }
  func.func @transform_0(%arg0: i32, %arg1: i32) -> (i32, i32, i32) {
    %c0_i32 = arith.constant 0 : i32
    %c0_i32_0 = arith.constant 0 : i32
    return %arg0, %c0_i32, %arg1 : i32, i32, i32
  }
  func.func @transform_1(%arg0: i32, %arg1: i32) -> (i32, i32, i32) {
    %c0_i32 = arith.constant 0 : i32
    %c0_i32_0 = arith.constant 0 : i32
    %c0_i32_1 = arith.constant 0 : i32
    return %arg0, %c0_i32, %c0_i32_0 : i32, i32, i32
  }
  func.func @transform_2(%arg0: i32, %arg1: i32) -> (i32, i32, i32) {
    %c0_i32 = arith.constant 0 : i32
    %c0_i32_0 = arith.constant 0 : i32
    %c0_i32_1 = arith.constant 0 : i32
    return %arg0, %c0_i32, %c0_i32_0 : i32, i32, i32
  }
  func.func @transform_3(%arg0: i32, %arg1: i32) -> (i32, i32, i32) {
    %c0_i32 = arith.constant 0 : i32
    %c0_i32_0 = arith.constant 0 : i32
    return %arg0, %c0_i32, %arg1 : i32, i32, i32
  }
}

module attributes {stable_mosaic.version = 11 : i64} {
  func.func @_conv_stats_kernel(%arg0: i32, %arg1: i32, %arg2: memref<1x64x64xf32, #tpu.memory_space<vmem>>, %arg3: memref<8x64xf32, #tpu.memory_space<vmem>>, %arg4: memref<1x8x64xf32, #tpu.memory_space<vmem>>, %arg5: memref<1x8x1xf32, #tpu.memory_space<vmem>>, %arg6: memref<1x8x1xf32, #tpu.memory_space<vmem>>) attributes {dimension_semantics = [#tpu.dimension_semantics<parallel>, #tpu.dimension_semantics<arbitrary>], iteration_bounds = array<i64: 2, 1>, scalar_prefetch = 0 : i64, scratch_operands = 0 : i64, tpu.core_type = #tpu.core_type<tc>, window_params = [{transform_indices = @transform_0, window_bounds = array<i64: 1, 64, 64>}, {pipeline_mode = #tpu.pipeline_mode<synchronous>, transform_indices = @transform_1, window_bounds = array<i64: 8, 64>}, {transform_indices = @transform_2, window_bounds = array<i64: 1, 8, 64>}, {transform_indices = @transform_3, window_bounds = array<i64: 1, 8, 1>}, {transform_indices = @transform_4, window_bounds = array<i64: 1, 8, 1>}]} {
    %c0 = arith.constant 0 : index
    %c0_0 = arith.constant 0 : index
    %0 = vector.load %arg3[%c0, %c0_0] : memref<8x64xf32, #tpu.memory_space<vmem>>, vector<8x64xf32>
    %c0_1 = arith.constant 0 : index
    %c0_2 = arith.constant 0 : index
    %c0_3 = arith.constant 0 : index
    %1 = vector.load %arg2[%c0_1, %c0_2, %c0_3] : memref<1x64x64xf32, #tpu.memory_space<vmem>>, vector<1x64x64xf32>
    %2 = vector.shape_cast %1 : vector<1x64x64xf32> to vector<64x64xf32>
    %cst = arith.constant dense<0.000000e+00> : vector<8x64xf32>
    %3 = tpu.matmul %0, %2, %cst {dimension_numbers = #tpu.dot_dimension_numbers<[1], [0], [0], [1], [0, 0, 1, 1], [], []>} : vector<8x64xf32>, vector<64x64xf32>, vector<8x64xf32> -> vector<8x64xf32>
    %c0_4 = arith.constant 0 : index
    %c0_5 = arith.constant 0 : index
    %c0_6 = arith.constant 0 : index
    %4 = vector.load %arg4[%c0_4, %c0_5, %c0_6] : memref<1x8x64xf32, #tpu.memory_space<vmem>>, vector<1x8x64xf32>
    %5 = vector.shape_cast %4 : vector<1x8x64xf32> to vector<8x64xf32>
    %6 = vector.shape_cast %3 : vector<8x64xf32> to vector<1x8x64xf32>
    tpu.vector_store %arg4[%c0_4, %c0_5, %c0_6], %6 {strides = array<i32>} : memref<1x8x64xf32, #tpu.memory_space<vmem>>, vector<1x8x64xf32>,
    %c0_i32 = arith.constant 0 : i32
    %7 = arith.cmpi eq, %arg1, %c0_i32 : i32
    %8 = arith.extui %7 : i1 to i32
    %c0_i32_7 = arith.constant 0 : i32
    %9 = arith.cmpi ne, %8, %c0_i32_7 : i32
    scf.if %9 {
      %cst_22 = arith.constant 0.000000e+00 : f32
      %27 = vector.broadcast %cst_22 : f32 to vector<1x8x1xf32>
      %c0_23 = arith.constant 0 : index
      %c0_24 = arith.constant 0 : index
      %c0_25 = arith.constant 0 : index
      %28 = vector.load %arg5[%c0_23, %c0_24, %c0_25] : memref<1x8x1xf32, #tpu.memory_space<vmem>>, vector<1x8x1xf32>
      tpu.vector_store %arg5[%c0_23, %c0_24, %c0_25], %27 {strides = array<i32>} : memref<1x8x1xf32, #tpu.memory_space<vmem>>, vector<1x8x1xf32>,
      %cst_26 = arith.constant 0.000000e+00 : f32
      %29 = vector.broadcast %cst_26 : f32 to vector<1x8x1xf32>
      %c0_27 = arith.constant 0 : index
      %c0_28 = arith.constant 0 : index
      %c0_29 = arith.constant 0 : index
      %30 = vector.load %arg6[%c0_27, %c0_28, %c0_29] : memref<1x8x1xf32, #tpu.memory_space<vmem>>, vector<1x8x1xf32>
      tpu.vector_store %arg6[%c0_27, %c0_28, %c0_29], %29 {strides = array<i32>} : memref<1x8x1xf32, #tpu.memory_space<vmem>>, vector<1x8x1xf32>,
    } else {
    }
    %c0_8 = arith.constant 0 : index
    %c0_9 = arith.constant 0 : index
    %c0_10 = arith.constant 0 : index
    %10 = vector.load %arg5[%c0_8, %c0_9, %c0_10] : memref<1x8x1xf32, #tpu.memory_space<vmem>>, vector<1x8x1xf32>
    %11 = vector.shape_cast %10 : vector<1x8x1xf32> to vector<8x1xf32>
    %cst_11 = arith.constant dense<0.000000e+00> : vector<8xf32>
    %12 = vector.multi_reduction <add>, %3, %cst_11 [1] : vector<8x64xf32> to vector<8xf32>
    %13 = vector.shape_cast %12 : vector<8xf32> to vector<8x1xf32>
    %14 = arith.addf %11, %13 : vector<8x1xf32>
    %c0_12 = arith.constant 0 : index
    %c0_13 = arith.constant 0 : index
    %c0_14 = arith.constant 0 : index
    %15 = vector.load %arg5[%c0_12, %c0_13, %c0_14] : memref<1x8x1xf32, #tpu.memory_space<vmem>>, vector<1x8x1xf32>
    %16 = vector.shape_cast %15 : vector<1x8x1xf32> to vector<8x1xf32>
    %17 = vector.shape_cast %14 : vector<8x1xf32> to vector<1x8x1xf32>
    tpu.vector_store %arg5[%c0_12, %c0_13, %c0_14], %17 {strides = array<i32>} : memref<1x8x1xf32, #tpu.memory_space<vmem>>, vector<1x8x1xf32>,
    %c0_15 = arith.constant 0 : index
    %c0_16 = arith.constant 0 : index
    %c0_17 = arith.constant 0 : index
    %18 = vector.load %arg6[%c0_15, %c0_16, %c0_17] : memref<1x8x1xf32, #tpu.memory_space<vmem>>, vector<1x8x1xf32>
    %19 = vector.shape_cast %18 : vector<1x8x1xf32> to vector<8x1xf32>
    %20 = arith.mulf %3, %3 : vector<8x64xf32>
    %cst_18 = arith.constant dense<0.000000e+00> : vector<8xf32>
    %21 = vector.multi_reduction <add>, %20, %cst_18 [1] : vector<8x64xf32> to vector<8xf32>
    %22 = vector.shape_cast %21 : vector<8xf32> to vector<8x1xf32>
    %23 = arith.addf %19, %22 : vector<8x1xf32>
    %c0_19 = arith.constant 0 : index
    %c0_20 = arith.constant 0 : index
    %c0_21 = arith.constant 0 : index
    %24 = vector.load %arg6[%c0_19, %c0_20, %c0_21] : memref<1x8x1xf32, #tpu.memory_space<vmem>>, vector<1x8x1xf32>
    %25 = vector.shape_cast %24 : vector<1x8x1xf32> to vector<8x1xf32>
    %26 = vector.shape_cast %23 : vector<8x1xf32> to vector<1x8x1xf32>
    tpu.vector_store %arg6[%c0_19, %c0_20, %c0_21], %26 {strides = array<i32>} : memref<1x8x1xf32, #tpu.memory_space<vmem>>, vector<1x8x1xf32>,
    return
  }
  func.func @transform_0(%arg0: i32, %arg1: i32) -> (i32, i32, i32) {
    %c0_i32 = arith.constant 0 : i32
    %c0_i32_0 = arith.constant 0 : i32
    return %arg0, %c0_i32, %arg1 : i32, i32, i32
  }
  func.func @transform_1(%arg0: i32, %arg1: i32) -> (i32, i32) {
    %c0_i32 = arith.constant 0 : i32
    %c0_i32_0 = arith.constant 0 : i32
    %c0_i32_1 = arith.constant 0 : i32
    return %c0_i32, %c0_i32_0 : i32, i32
  }
  func.func @transform_2(%arg0: i32, %arg1: i32) -> (i32, i32, i32) {
    %c0_i32 = arith.constant 0 : i32
    %c0_i32_0 = arith.constant 0 : i32
    return %arg0, %c0_i32, %arg1 : i32, i32, i32
  }
  func.func @transform_3(%arg0: i32, %arg1: i32) -> (i32, i32, i32) {
    %c0_i32 = arith.constant 0 : i32
    %c0_i32_0 = arith.constant 0 : i32
    %c0_i32_1 = arith.constant 0 : i32
    return %arg0, %c0_i32, %c0_i32_0 : i32, i32, i32
  }
  func.func @transform_4(%arg0: i32, %arg1: i32) -> (i32, i32, i32) {
    %c0_i32 = arith.constant 0 : i32
    %c0_i32_0 = arith.constant 0 : i32
    %c0_i32_1 = arith.constant 0 : i32
    return %arg0, %c0_i32, %c0_i32_0 : i32, i32, i32
  }
}

</mosaic_0001>

<llo_original>
// kernel: downsampling_block.3
$region0: #{downsampling_block.3}
  #allocation0 [shape = 'u32[]', space=smem, size = 0x4, offset = 0x4, fixed_abs, tag = 'smem constant byte address 0x4 - core index']
  #allocation1 [shape = 'u32[72,128]{1,0:T(1,128)}', space=vmem, size = 0x9000, scoped, tag = 'internal scratch']
  %s0 = inlined_call_operand.vmem [shape: f32[2,8,64], index: 0, kind: input, shape index: {}]
  %s1 = inlined_call_operand.vmem [shape: f32[2,8,1], index: 1, kind: input, shape index: {}]
  %s2 = inlined_call_operand.vmem [shape: f32[2,8,1], index: 2, kind: input, shape index: {}]
  %s3 = inlined_call_operand.vmem [shape: f32[2,8,64], index: 3, kind: output, shape index: {}]
  %s4 = sld [smem:[#allocation0]]
  $region45: #{downsampling_block.3} parent=0
    _
  %s6 = ssub.s32 1, %s4
  %s7 = scalar_select 0, %s6, %s4
  loop: start=0, step=1, limit=4
  $region2: #{downsampling_block.3} parent=0 // loop_pre_header
    _
  $region3: #{downsampling_block.3} parent=0 // loop_header
    %s9 = sphi 0, %s13
    %p10 = scmp.ge.s32.totalorder %s9, 4
    %s16 = sphi 0, %s28
    %s17 = sphi 0, %s24
    %s18 = sphi 0, %s16
    %s19 = sphi 0, %s17
    %s20 = sphi 0, %s18
    %s21 = sphi 0, %s19
    %s33 = sphi 0, %s35
    %s36 = sphi 0, %s33
    %s37 = sphi 0, %s36
    %s53 = sphi 0, %s37
    %s59 = sphi 0, %s61
    %s62 = sphi 0, %s59
    %s63 = sphi 0, %s62
    %s79 = sphi 0, %s63
    %s85 = sphi 0, %s87
    %s88 = sphi 0, %s85
    %s89 = sphi 0, %s88
    %s105 = sphi 0, %s89
    %s113 = sphi 0, %s115
    %s116 = sphi 0, %s113
    %s117 = sphi 0, %s116
    %s133 = sphi 0, %s117
  $region4: #{downsampling_block.3} parent=0 // loop_header_branch
    %12 = sbr.rel (%p10) target = $region8
  $region5: #{downsampling_block.3} parent=0 // loop_body
    %s14 = ssub.s32 %s9, 1
    %s15 = ssub.s32 %s9, 2
    %s22 = sadd.s32 1, %s17
    %p23 = scmp.ge.s32.totalorder %s22, 1
    %s24 = scalar_select %p23, 0, %s22
    %s25 = sadd.s32 1, %s16
    %s26 = scalar_select %p23, %s25, %s16
    %p27 = scmp.ge.s32.totalorder %s26, 2
    %s28 = scalar_select %p27, 0, %s26
    %s29 = ssub.s32 %s16, %s28
    %s30 = ssub.s32 %s17, %s24
    %s31 = sor.u32 %s29, %s30
    %p32 = scmp.eq.s32.totalorder %s31, 0
    %s34 = sadd.s32 %s33, 1
    %s35 = scalar_select %p32, %s33, %s34
    %p38 = pneg %p32
    %p39 = scmp.eq.s32.totalorder %s9, 1
    %p40 = por %p38, %p39
    %p41 = scmp.ne.s32.totalorder %s33, %s36
    %p42 = scmp.eq.s32.totalorder %s9, 0
    %p43 = por %p41, %p42
    %p44 = scmp.ne.s32.totalorder %s33, %s36
    %p45 = scmp.eq.s32.totalorder %s14, 1
    %p46 = por %p44, %p45
    %p47 = scmp.ne.s32.totalorder %s36, %s37
    %p48 = scmp.eq.s32.totalorder %s14, 0
    %p49 = por %p47, %p48
    %p50 = scmp.ne.s32.totalorder %s36, %s37
    %p51 = scmp.eq.s32.totalorder %s15, 1
    %p52 = por %p50, %p51
    %p54 = scmp.ne.s32.totalorder %s37, %s53
    %p55 = scmp.eq.s32.totalorder %s15, 0
    %p56 = por %p54, %p55
    %s57 = ssub.s32 %s16, %s28
    %p58 = scmp.eq.s32.totalorder %s57, 0
    %s60 = sadd.s32 %s59, 1
    %s61 = scalar_select %p58, %s59, %s60
    %p64 = pneg %p58
    %p65 = scmp.eq.s32.totalorder %s9, 1
    %p66 = por %p64, %p65
    %p67 = scmp.ne.s32.totalorder %s59, %s62
    %p68 = scmp.eq.s32.totalorder %s9, 0
    %p69 = por %p67, %p68
    %p70 = scmp.ne.s32.totalorder %s59, %s62
    %p71 = scmp.eq.s32.totalorder %s14, 1
    %p72 = por %p70, %p71
    %p73 = scmp.ne.s32.totalorder %s62, %s63
    %p74 = scmp.eq.s32.totalorder %s14, 0
    %p75 = por %p73, %p74
    %p76 = scmp.ne.s32.totalorder %s62, %s63
    %p77 = scmp.eq.s32.totalorder %s15, 1
    %p78 = por %p76, %p77
    %p80 = scmp.ne.s32.totalorder %s63, %s79
    %p81 = scmp.eq.s32.totalorder %s15, 0
    %p82 = por %p80, %p81
    %s83 = ssub.s32 %s16, %s28
    %p84 = scmp.eq.s32.totalorder %s83, 0
    %s86 = sadd.s32 %s85, 1
    %s87 = scalar_select %p84, %s85, %s86
    %p90 = pneg %p84
    %p91 = scmp.eq.s32.totalorder %s9, 1
    %p92 = por %p90, %p91
    %p93 = scmp.ne.s32.totalorder %s85, %s88
    %p94 = scmp.eq.s32.totalorder %s9, 0
    %p95 = por %p93, %p94
    %p96 = scmp.ne.s32.totalorder %s85, %s88
    %p97 = scmp.eq.s32.totalorder %s14, 1
    %p98 = por %p96, %p97
    %p99 = scmp.ne.s32.totalorder %s88, %s89
    %p100 = scmp.eq.s32.totalorder %s14, 0
    %p101 = por %p99, %p100
    %p102 = scmp.ne.s32.totalorder %s88, %s89
    %p103 = scmp.eq.s32.totalorder %s15, 1
    %p104 = por %p102, %p103
    %p106 = scmp.ne.s32.totalorder %s89, %s105
    %p107 = scmp.eq.s32.totalorder %s15, 0
    %p108 = por %p106, %p107
    %s109 = ssub.s32 %s16, %s28
    %s110 = ssub.s32 %s17, %s24
    %s111 = sor.u32 %s109, %s110
    %p112 = scmp.eq.s32.totalorder %s111, 0
    %s114 = sadd.s32 %s113, 1
    %s115 = scalar_select %p112, %s113, %s114
    %p118 = pneg %p112
    %p119 = scmp.eq.s32.totalorder %s9, 1
    %p120 = por %p118, %p119
    %p121 = scmp.ne.s32.totalorder %s113, %s116
    %p122 = scmp.eq.s32.totalorder %s9, 0
    %p123 = por %p121, %p122
    %p124 = scmp.ne.s32.totalorder %s113, %s116
    %p125 = scmp.eq.s32.totalorder %s14, 1
    %p126 = por %p124, %p125
    %p127 = scmp.ne.s32.totalorder %s116, %s117
    %p128 = scmp.eq.s32.totalorder %s14, 0
    %p129 = por %p127, %p128
    %p130 = scmp.ne.s32.totalorder %s116, %s117
    %p131 = scmp.eq.s32.totalorder %s15, 1
    %p132 = por %p130, %p131
    %p134 = scmp.ne.s32.totalorder %s117, %s133
    %p135 = scmp.eq.s32.totalorder %s15, 0
    %p136 = por %p134, %p135
    %p137 = scmp.le.s32.totalorder 1, %s9
    %p138 = scmp.lt.s32.totalorder %s9, 3
    %p139 = pnand %p137, %p138
    %p140 = pneg %p139
    // Predicated region
    $region9: #{downsampling_block.3} parent=5 // pred_check
      _
    $region10: #{downsampling_block.3} parent=5 // pred_check_branch
      %142 = sbr.rel (%p139) target = $region12
    $region11: #{downsampling_block.3} parent=5 // pred_region
      %s143 = ssub.s32 %s9, 1
    $region12: #{downsampling_block.3} parent=5 // pred_fallthru
      _
    %p144 = scmp.lt.s32.totalorder %s9, 2
    // Predicated region
    $region13: #{downsampling_block.3} parent=5 // pred_check
      %p145 = pneg %p144
    $region14: #{downsampling_block.3} parent=5 // pred_check_branch
      %147 = sbr.rel (%p145) target = $region16
    $region15: #{downsampling_block.3} parent=5 // pred_region
      // Predicated region
      $region17: #{downsampling_block.3} parent=15 // pred_check
        %p148 = pneg %p43
      $region18: #{downsampling_block.3} parent=15 // pred_check_branch
        %150 = sbr.rel (%p148) target = $region20
      $region19: #{downsampling_block.3} parent=15 // pred_region
        %p151 = scmp.lt.s32.totalorder %s16, 1
        %s152 = scalar_select %p151, %s16, 1
        %p153 = scmp.lt.s32.totalorder %s17, 0
        %s154 = scalar_select %p153, %s17, 0
        %s155 = sadd.s32 %s154, %s152
        %s156 = smul.addr %s155, 8
        %s157 = scalar_lea.vmem %s0, %s156
      $region20: #{downsampling_block.3} parent=15 // pred_fallthru
        _
      // Predicated region
      $region21: #{downsampling_block.3} parent=15 // pred_check
        %p158 = pneg %p69
      $region22: #{downsampling_block.3} parent=15 // pred_check_branch
        %160 = sbr.rel (%p158) target = $region24
      $region23: #{downsampling_block.3} parent=15 // pred_region
        %p161 = scmp.lt.s32.totalorder %s16, 1
        %s162 = scalar_select %p161, %s16, 1
        %s163 = smul.addr %s162, 8
        %s164 = scalar_lea.vmem %s1, %s163
      $region24: #{downsampling_block.3} parent=15 // pred_fallthru
        _
      // Predicated region
      $region25: #{downsampling_block.3} parent=15 // pred_check
        %p165 = pneg %p95
      $region26: #{downsampling_block.3} parent=15 // pred_check_branch
        %167 = sbr.rel (%p165) target = $region28
      $region27: #{downsampling_block.3} parent=15 // pred_region
        %p168 = scmp.lt.s32.totalorder %s16, 1
        %s169 = scalar_select %p168, %s16, 1
        %s170 = smul.addr %s169, 8
        %s171 = scalar_lea.vmem %s2, %s170
      $region28: #{downsampling_block.3} parent=15 // pred_fallthru
        _
    $region16: #{downsampling_block.3} parent=5 // pred_fallthru
      _
    %p172 = scmp.le.s32.totalorder 1, %s9
    %p173 = scmp.lt.s32.totalorder %s9, 3
    %p174 = pnand %p172, %p173
    %p175 = pneg %p174
    // Predicated region
    $region29: #{downsampling_block.3} parent=5 // pred_check
      _
    $region30: #{downsampling_block.3} parent=5 // pred_check_branch
      %177 = sbr.rel (%p174) target = $region32
    $region31: #{downsampling_block.3} parent=5 // pred_region
      %s178 = ssub.s32 %s9, 1
      %p179 = scmp.lt.s32.totalorder %s18, 1
      %s180 = scalar_select %p179, %s18, 1
      %p181 = scmp.lt.s32.totalorder %s19, 0
      %s182 = scalar_select %p181, %s19, 0
      %s183 = sadd.s32 %s182, %s180
      %s184 = smul.addr %s183, 8
      %s185 = scalar_lea.vmem %s0, %s184
      %p186 = pneg %p49
      %p187 = pneg %p46
      %p188 = scmp.lt.s32.totalorder %s18, 1
      %s189 = scalar_select %p188, %s18, 1
      %s190 = smul.addr %s189, 8
      %s191 = scalar_lea.vmem %s1, %s190
      %p192 = pneg %p75
      %p193 = pneg %p72
      %p194 = scmp.lt.s32.totalorder %s18, 1
      %s195 = scalar_select %p194, %s18, 1
      %s196 = smul.addr %s195, 8
      %s197 = scalar_lea.vmem %s2, %s196
      %p198 = pneg %p101
      %p199 = pneg %p98
      %p200 = pneg %p129
      %p201 = pneg %p126
      %p202 = scmp.lt.s32.totalorder %s18, 1
      %s203 = scalar_select %p202, %s18, 1
      %p204 = scmp.lt.s32.totalorder %s19, 0
      %s205 = scalar_select %p204, %s19, 0
      %s206 = sadd.s32 %s205, %s203
      %s207 = smul.addr %s206, 8
      %s208 = scalar_lea.vmem %s3, %s207
      %p209 = scmp.lt.s32.totalorder %s18, 1
      %s210 = scalar_select %p209, %s18, 1
      %p211 = scmp.lt.s32.totalorder %s19, 0
      %s212 = scalar_select %p211, %s19, 0
      %s213 = sadd.s32 %s212, %s210
      %s214 = smul.addr %s213, 8
      %s215 = scalar_lea.vmem %s0, %s214
      %p216 = scmp.lt.s32.totalorder %s18, 1
      %s217 = scalar_select %p216, %s18, 1
      %s218 = smul.addr %s217, 8
      %s219 = scalar_lea.vmem %s1, %s218
      %p220 = scmp.lt.s32.totalorder %s18, 1
      %s221 = scalar_select %p220, %s18, 1
      %s222 = smul.addr %s221, 8
      %s223 = scalar_lea.vmem %s2, %s222
      %p224 = scmp.lt.s32.totalorder %s18, 1
      %s225 = scalar_select %p224, %s18, 1
      %p226 = scmp.lt.s32.totalorder %s19, 0
      %s227 = scalar_select %p226, %s19, 0
      %s228 = sadd.s32 %s227, %s225
      %s229 = smul.addr %s228, 8
      %s230 = scalar_lea.vmem %s3, %s229
      %v231 = vld [vmem:[%s215] sm:$0xff]
      %v232 = vld [vmem:[%s219] sm:$0xff]
      %234 = vset.pattern.permute.xlu0 0
      %235 = vperm.xlu0 %234, %v232
      %v236 = vpop.permute.xlu0 %235
      %v238 = vmul.f32 %v231, %v236
      %v239 = vld [vmem:[%s223] sm:$0xff]
      %241 = vset.pattern.permute.xlu0 0
      %242 = vperm.xlu0 %241, %v239
      %v243 = vpop.permute.xlu0 %242
      %v245 = vadd.f32 %v238, %v243
      %vm246 = vcmp.ge.f32.partialorder %v245, 0.0
      %v247 = vmul.f32 %v245, 0.01
      %v248 = vsel %vm246, %v245, %v247
      %vm249 = vcmask 523264
      %250 = vst.msk [vmem:[%s230] sm:$0xff] %vm249, %v248
      %p251 = scmp.lt.s32.totalorder %s18, 1
      %s252 = scalar_select %p251, %s18, 1
      %p253 = scmp.lt.s32.totalorder %s19, 0
      %s254 = scalar_select %p253, %s19, 0
      %s255 = sadd.s32 %s254, %s252
      %s256 = smul.addr %s255, 8
      %s257 = scalar_lea.vmem %s3, %s256
      // Predicated region
      $region33: #{downsampling_block.3} parent=31 // pred_check
        %p258 = pneg %p126
      $region34: #{downsampling_block.3} parent=31 // pred_check_branch
        %260 = sbr.rel (%p258) target = $region36
      $region35: #{downsampling_block.3} parent=31 // pred_region
        _
      $region36: #{downsampling_block.3} parent=31 // pred_fallthru
        _
    $region32: #{downsampling_block.3} parent=5 // pred_fallthru
      _
    %p261 = scmp.le.s32.totalorder 2, %s9
    // Predicated region
    $region37: #{downsampling_block.3} parent=5 // pred_check
      %p262 = pneg %p261
    $region38: #{downsampling_block.3} parent=5 // pred_check_branch
      %264 = sbr.rel (%p262) target = $region40
    $region39: #{downsampling_block.3} parent=5 // pred_region
      %s265 = ssub.s32 %s9, 2
      // Predicated region
      $region41: #{downsampling_block.3} parent=39 // pred_check
        %p266 = pneg %p132
      $region42: #{downsampling_block.3} parent=39 // pred_check_branch
        %268 = sbr.rel (%p266) target = $region44
      $region43: #{downsampling_block.3} parent=39 // pred_region
        %p269 = scmp.lt.s32.totalorder %s20, 1
        %s270 = scalar_select %p269, %s20, 1
        %p271 = scmp.lt.s32.totalorder %s21, 0
        %s272 = scalar_select %p271, %s21, 0
        %s273 = sadd.s32 %s272, %s270
        %s274 = smul.addr %s273, 8
        %s275 = scalar_lea.vmem %s3, %s274
      $region44: #{downsampling_block.3} parent=39 // pred_fallthru
        _
    $region40: #{downsampling_block.3} parent=5 // pred_fallthru
      _
  $region6: #{downsampling_block.3} parent=0 // loop_footer
    %s13 = sadd.s32 1, %s9
  $region7: #{downsampling_block.3} parent=0 // loop_footer_branch
    %8 = sbr.rel target = $region3
  $region8: #{downsampling_block.3} parent=0 // loop_exit
    _

// kernel: downsampling_block.2
$region0: #{downsampling_block.2}
  #allocation0 [shape = 'u32[]', space=smem, size = 0x4, offset = 0x4, fixed_abs, tag = 'smem constant byte address 0x4 - core index']
  #allocation1 [shape = 'u32[72,128]{1,0:T(1,128)}', space=vmem, size = 0x9000, scoped, tag = 'internal scratch']
  %s0 = inlined_call_operand.vmem [shape: f32[2,64,64], index: 0, kind: input, shape index: {}]
  %s1 = inlined_call_operand.vmem [shape: f32[8,64], index: 1, kind: input, shape index: {}]
  %s2 = inlined_call_operand.vmem [shape: f32[2,8,64], index: 2, kind: output, shape index: {0}]
  %s3 = inlined_call_operand.vmem [shape: f32[2,8,1], index: 3, kind: output, shape index: {1}]
  %s4 = inlined_call_operand.vmem [shape: f32[2,8,1], index: 4, kind: output, shape index: {2}]
  %5 = xla_tuple %s2, %s3, %s4
  %s6 = sld [smem:[#allocation0]]
  $region61: #{downsampling_block.2} parent=0
    _
  %s8 = ssub.s32 1, %s6
  %s9 = scalar_select 0, %s8, %s6
  loop: start=0, step=1, limit=4
  $region2: #{downsampling_block.2} parent=0 // loop_pre_header
    _
  $region3: #{downsampling_block.2} parent=0 // loop_header
    %s11 = sphi 0, %s15
    %p12 = scmp.ge.s32.totalorder %s11, 4
    %s18 = sphi 0, %s30
    %s19 = sphi 0, %s26
    %s20 = sphi 0, %s18
    %s21 = sphi 0, %s19
    %s22 = sphi 0, %s20
    %s23 = sphi 0, %s21
    %s35 = sphi 0, %s37
    %s38 = sphi 0, %s35
    %s39 = sphi 0, %s38
    %s55 = sphi 0, %s39
    %s59 = sphi 0, %s59
    %s61 = sphi 0, %s59
    %s62 = sphi 0, %s61
    %s76 = sphi 0, %s62
    %s84 = sphi 0, %s86
    %s87 = sphi 0, %s84
    %s88 = sphi 0, %s87
    %s104 = sphi 0, %s88
    %s110 = sphi 0, %s112
    %s113 = sphi 0, %s110
    %s114 = sphi 0, %s113
    %s130 = sphi 0, %s114
    %s136 = sphi 0, %s138
    %s139 = sphi 0, %s136
    %s140 = sphi 0, %s139
    %s156 = sphi 0, %s140
  $region4: #{downsampling_block.2} parent=0 // loop_header_branch
    %14 = sbr.rel (%p12) target = $region8
  $region5: #{downsampling_block.2} parent=0 // loop_body
    %s16 = ssub.s32 %s11, 1
    %s17 = ssub.s32 %s11, 2
    %s24 = sadd.s32 1, %s19
    %p25 = scmp.ge.s32.totalorder %s24, 1
    %s26 = scalar_select %p25, 0, %s24
    %s27 = sadd.s32 1, %s18
    %s28 = scalar_select %p25, %s27, %s18
    %p29 = scmp.ge.s32.totalorder %s28, 2
    %s30 = scalar_select %p29, 0, %s28
    %s31 = ssub.s32 %s18, %s30
    %s32 = ssub.s32 %s19, %s26
    %s33 = sor.u32 %s31, %s32
    %p34 = scmp.eq.s32.totalorder %s33, 0
    %s36 = sadd.s32 %s35, 1
    %s37 = scalar_select %p34, %s35, %s36
    %p40 = pneg %p34
    %p41 = scmp.eq.s32.totalorder %s11, 1
    %p42 = por %p40, %p41
    %p43 = scmp.ne.s32.totalorder %s35, %s38
    %p44 = scmp.eq.s32.totalorder %s11, 0
    %p45 = por %p43, %p44
    %p46 = scmp.ne.s32.totalorder %s35, %s38
    %p47 = scmp.eq.s32.totalorder %s16, 1
    %p48 = por %p46, %p47
    %p49 = scmp.ne.s32.totalorder %s38, %s39
    %p50 = scmp.eq.s32.totalorder %s16, 0
    %p51 = por %p49, %p50
    %p52 = scmp.ne.s32.totalorder %s38, %s39
    %p53 = scmp.eq.s32.totalorder %s17, 1
    %p54 = por %p52, %p53
    %p56 = scmp.ne.s32.totalorder %s39, %s55
    %p57 = scmp.eq.s32.totalorder %s17, 0
    %p58 = por %p56, %p57
    %s60 = sadd.s32 %s59, 1
    %p63 = scmp.eq.s32.totalorder %s11, 1
    %p64 = scmp.ne.s32.totalorder %s59, %s61
    %p65 = scmp.eq.s32.totalorder %s11, 0
    %p66 = por %p64, %p65
    %p67 = scmp.ne.s32.totalorder %s59, %s61
    %p68 = scmp.eq.s32.totalorder %s16, 1
    %p69 = por %p67, %p68
    %p70 = scmp.ne.s32.totalorder %s61, %s62
    %p71 = scmp.eq.s32.totalorder %s16, 0
    %p72 = por %p70, %p71
    %p73 = scmp.ne.s32.totalorder %s61, %s62
    %p74 = scmp.eq.s32.totalorder %s17, 1
    %p75 = por %p73, %p74
    %p77 = scmp.ne.s32.totalorder %s62, %s76
    %p78 = scmp.eq.s32.totalorder %s17, 0
    %p79 = por %p77, %p78
    %s80 = ssub.s32 %s18, %s30
    %s81 = ssub.s32 %s19, %s26
    %s82 = sor.u32 %s80, %s81
    %p83 = scmp.eq.s32.totalorder %s82, 0
    %s85 = sadd.s32 %s84, 1
    %s86 = scalar_select %p83, %s84, %s85
    %p89 = pneg %p83
    %p90 = scmp.eq.s32.totalorder %s11, 1
    %p91 = por %p89, %p90
    %p92 = scmp.ne.s32.totalorder %s84, %s87
    %p93 = scmp.eq.s32.totalorder %s11, 0
    %p94 = por %p92, %p93
    %p95 = scmp.ne.s32.totalorder %s84, %s87
    %p96 = scmp.eq.s32.totalorder %s16, 1
    %p97 = por %p95, %p96
    %p98 = scmp.ne.s32.totalorder %s87, %s88
    %p99 = scmp.eq.s32.totalorder %s16, 0
    %p100 = por %p98, %p99
    %p101 = scmp.ne.s32.totalorder %s87, %s88
    %p102 = scmp.eq.s32.totalorder %s17, 1
    %p103 = por %p101, %p102
    %p105 = scmp.ne.s32.totalorder %s88, %s104
    %p106 = scmp.eq.s32.totalorder %s17, 0
    %p107 = por %p105, %p106
    %s108 = ssub.s32 %s18, %s30
    %p109 = scmp.eq.s32.totalorder %s108, 0
    %s111 = sadd.s32 %s110, 1
    %s112 = scalar_select %p109, %s110, %s111
    %p115 = pneg %p109
    %p116 = scmp.eq.s32.totalorder %s11, 1
    %p117 = por %p115, %p116
    %p118 = scmp.ne.s32.totalorder %s110, %s113
    %p119 = scmp.eq.s32.totalorder %s11, 0
    %p120 = por %p118, %p119
    %p121 = scmp.ne.s32.totalorder %s110, %s113
    %p122 = scmp.eq.s32.totalorder %s16, 1
    %p123 = por %p121, %p122
    %p124 = scmp.ne.s32.totalorder %s113, %s114
    %p125 = scmp.eq.s32.totalorder %s16, 0
    %p126 = por %p124, %p125
    %p127 = scmp.ne.s32.totalorder %s113, %s114
    %p128 = scmp.eq.s32.totalorder %s17, 1
    %p129 = por %p127, %p128
    %p131 = scmp.ne.s32.totalorder %s114, %s130
    %p132 = scmp.eq.s32.totalorder %s17, 0
    %p133 = por %p131, %p132
    %s134 = ssub.s32 %s18, %s30
    %p135 = scmp.eq.s32.totalorder %s134, 0
    %s137 = sadd.s32 %s136, 1
    %s138 = scalar_select %p135, %s136, %s137
    %p141 = pneg %p135
    %p142 = scmp.eq.s32.totalorder %s11, 1
    %p143 = por %p141, %p142
    %p144 = scmp.ne.s32.totalorder %s136, %s139
    %p145 = scmp.eq.s32.totalorder %s11, 0
    %p146 = por %p144, %p145
    %p147 = scmp.ne.s32.totalorder %s136, %s139
    %p148 = scmp.eq.s32.totalorder %s16, 1
    %p149 = por %p147, %p148
    %p150 = scmp.ne.s32.totalorder %s139, %s140
    %p151 = scmp.eq.s32.totalorder %s16, 0
    %p152 = por %p150, %p151
    %p153 = scmp.ne.s32.totalorder %s139, %s140
    %p154 = scmp.eq.s32.totalorder %s17, 1
    %p155 = por %p153, %p154
    %p157 = scmp.ne.s32.totalorder %s140, %s156
    %p158 = scmp.eq.s32.totalorder %s17, 0
    %p159 = por %p157, %p158
    %p160 = scmp.le.s32.totalorder 1, %s11
    %p161 = scmp.lt.s32.totalorder %s11, 3
    %p162 = pnand %p160, %p161
    %p163 = pneg %p162
    // Predicated region
    $region9: #{downsampling_block.2} parent=5 // pred_check
      _
    $region10: #{downsampling_block.2} parent=5 // pred_check_branch
      %165 = sbr.rel (%p162) target = $region12
    $region11: #{downsampling_block.2} parent=5 // pred_region
      %s166 = ssub.s32 %s11, 1
      // Predicated region
      $region13: #{downsampling_block.2} parent=11 // pred_check
        %p167 = pneg %p72
      $region14: #{downsampling_block.2} parent=11 // pred_check_branch
        %169 = sbr.rel (%p167) target = $region16
      $region15: #{downsampling_block.2} parent=11 // pred_region
        _
      $region16: #{downsampling_block.2} parent=11 // pred_fallthru
        _
    $region12: #{downsampling_block.2} parent=5 // pred_fallthru
      _
    %p170 = scmp.lt.s32.totalorder %s11, 2
    // Predicated region
    $region17: #{downsampling_block.2} parent=5 // pred_check
      %p171 = pneg %p170
    $region18: #{downsampling_block.2} parent=5 // pred_check_branch
      %173 = sbr.rel (%p171) target = $region20
    $region19: #{downsampling_block.2} parent=5 // pred_region
      // Predicated region
      $region21: #{downsampling_block.2} parent=19 // pred_check
        %p174 = pneg %p45
      $region22: #{downsampling_block.2} parent=19 // pred_check_branch
        %176 = sbr.rel (%p174) target = $region24
      $region23: #{downsampling_block.2} parent=19 // pred_region
        %p177 = scmp.lt.s32.totalorder %s18, 1
        %s178 = scalar_select %p177, %s18, 1
        %p179 = scmp.lt.s32.totalorder %s19, 0
        %s180 = scalar_select %p179, %s19, 0
        %s181 = smul.addr %s178, 8
        %s182 = sadd.s32 %s180, %s181
        %s183 = smul.addr %s182, 8
        %s184 = scalar_lea.vmem %s0, %s183
      $region24: #{downsampling_block.2} parent=19 // pred_fallthru
        _
    $region20: #{downsampling_block.2} parent=5 // pred_fallthru
      _
    %p185 = scmp.le.s32.totalorder 1, %s11
    %p186 = scmp.lt.s32.totalorder %s11, 3
    %p187 = pnand %p185, %p186
    %p188 = pneg %p187
    // Predicated region
    $region25: #{downsampling_block.2} parent=5 // pred_check
      _
    $region26: #{downsampling_block.2} parent=5 // pred_check_branch
      %190 = sbr.rel (%p187) target = $region28
    $region27: #{downsampling_block.2} parent=5 // pred_region
      %s191 = ssub.s32 %s11, 1
      %p192 = scmp.lt.s32.totalorder %s20, 1
      %s193 = scalar_select %p192, %s20, 1
      %p194 = scmp.lt.s32.totalorder %s21, 0
      %s195 = scalar_select %p194, %s21, 0
      %s196 = smul.addr %s193, 8
      %s197 = sadd.s32 %s195, %s196
      %s198 = smul.addr %s197, 8
      %s199 = scalar_lea.vmem %s0, %s198
      %p200 = pneg %p51
      %p201 = pneg %p48
      %p202 = pneg %p72
      %p203 = pneg %p69
      %p204 = pneg %p100
      %p205 = pneg %p97
      %p206 = scmp.lt.s32.totalorder %s20, 1
      %s207 = scalar_select %p206, %s20, 1
      %p208 = scmp.lt.s32.totalorder %s21, 0
      %s209 = scalar_select %p208, %s21, 0
      %s210 = sadd.s32 %s209, %s207
      %s211 = smul.addr %s210, 8
      %s212 = scalar_lea.vmem %s2, %s211
      %p213 = pneg %p126
      %p214 = pneg %p123
      %p215 = scmp.lt.s32.totalorder %s20, 1
      %s216 = scalar_select %p215, %s20, 1
      %s217 = smul.addr %s216, 8
      %s218 = scalar_lea.vmem %s3, %s217
      %p219 = pneg %p152
      %p220 = pneg %p149
      %p221 = scmp.lt.s32.totalorder %s20, 1
      %s222 = scalar_select %p221, %s20, 1
      %s223 = smul.addr %s222, 8
      %s224 = scalar_lea.vmem %s4, %s223
      %p225 = scmp.lt.s32.totalorder %s20, 1
      %s226 = scalar_select %p225, %s20, 1
      %p227 = scmp.lt.s32.totalorder %s21, 0
      %s228 = scalar_select %p227, %s21, 0
      %s229 = smul.addr %s226, 8
      %s230 = sadd.s32 %s228, %s229
      %s231 = smul.addr %s230, 8
      %s232 = scalar_lea.vmem %s0, %s231
      %p233 = scmp.lt.s32.totalorder %s20, 1
      %s234 = scalar_select %p233, %s20, 1
      %p235 = scmp.lt.s32.totalorder %s21, 0
      %s236 = scalar_select %p235, %s21, 0
      %s237 = sadd.s32 %s236, %s234
      %s238 = smul.addr %s237, 8
      %s239 = scalar_lea.vmem %s2, %s238
      %p240 = scmp.lt.s32.totalorder %s20, 1
      %s241 = scalar_select %p240, %s20, 1
      %s242 = smul.addr %s241, 8
      %s243 = scalar_lea.vmem %s3, %s242
      %p244 = scmp.lt.s32.totalorder %s20, 1
      %s245 = scalar_select %p244, %s20, 1
      %s246 = smul.addr %s245, 8
      %s247 = scalar_lea.vmem %s4, %s246
      %v248 = vld [vmem:[%s1] sm:$0xff]
      %v249 = vld [vmem:[%s232] sm:$0xff]
      %v250 = vld [vmem:[%s232 + $0x8] sm:$0xff]
      %v251 = vld [vmem:[%s232 + $0x10] sm:$0xff]
      %v252 = vld [vmem:[%s232 + $0x18] sm:$0xff]
      %v253 = vld [vmem:[%s232 + $0x20] sm:$0xff]
      %v254 = vld [vmem:[%s232 + $0x28] sm:$0xff]
      %v255 = vld [vmem:[%s232 + $0x30] sm:$0xff]
      %v256 = vld [vmem:[%s232 + $0x38] sm:$0xff]
      %vm257 = vcmask 523264
      %v259 = vsel %vm257, %v248, 0
      %261 = vmatpush.msra.mxu0 0.0
      %262 = vmatpush.msra.mxu0 0.0
      %263 = vmatpush.msra.mxu0 0.0
      %264 = vmatpush.msra.mxu0 0.0
      %265 = vmatpush.msra.mxu0 0.0
      %266 = vmatpush.msra.mxu0 0.0
      %267 = vmatpush.msra.mxu0 0.0
      %268 = vmatpush.msra.mxu0 0.0
      %269 = vmatpush.msra.mxu0 %v256
      %270 = vmatpush.msra.mxu0 %v255
      %271 = vmatpush.msra.mxu0 %v254
      %272 = vmatpush.msra.mxu0 %v253
      %273 = vmatpush.msra.mxu0 %v252
      %274 = vmatpush.msra.mxu0 %v251
      %275 = vmatpush.msra.mxu0 %v250
      %276 = vmatpush.msra.mxu0 %v249
      %277 = vmatmul.f32.gmra.mxu0 %v259
      %v278 = vpop.f32.mrf.mxu0
      %v279 = vadd.f32 0.0, %v278
      %280 = vdwg.mxu0
      %281 = vst.msk [vmem:[%s239] sm:$0xff] %vm257, %v279
      %p282 = scmp.eq.s32.totalorder %s21, 0
      // Predicated region
      $region29: #{downsampling_block.2} parent=27 // pred_check
        %p283 = pneg %p282
      $region30: #{downsampling_block.2} parent=27 // pred_check_branch
        %285 = sbr.rel (%p283) target = $region32
      $region31: #{downsampling_block.2} parent=27 // pred_region
        %vm286 = vcmask 7168
        %287 = vst.msk [vmem:[%s243] sm:$0xff] %vm286, 0.0
        %288 = vst.msk [vmem:[%s247] sm:$0xff] %vm286, 0.0
      $region32: #{downsampling_block.2} parent=27 // pred_fallthru
        _
      %v289 = vld [vmem:[%s243] sm:$0xff]
      %v290 = vsel %vm257, %v279, 0.0
      %291 = vadd.xlane.f32.xlu0 %v290
      %v292 = vpop.xlane.xlu0 %291
      %v293 = vadd.f32 %v289, %v292
      %vm294 = vcmask 7168
      %295 = vst.msk [vmem:[%s243] sm:$0xff] %vm294, %v293
      %v296 = vld [vmem:[%s247] sm:$0xff]
      %v297 = vmul.f32 %v279, %v279
      %v298 = vsel %vm257, %v297, 0.0
      %299 = vadd.xlane.f32.xlu0 %v298
      %v300 = vpop.xlane.xlu0 %299
      %v301 = vadd.f32 %v296, %v300
      %302 = vst.msk [vmem:[%s247] sm:$0xff] %vm294, %v301
      %p303 = scmp.lt.s32.totalorder %s20, 1
      %s304 = scalar_select %p303, %s20, 1
      %p305 = scmp.lt.s32.totalorder %s21, 0
      %s306 = scalar_select %p305, %s21, 0
      %s307 = sadd.s32 %s306, %s304
      %s308 = smul.addr %s307, 8
      %s309 = scalar_lea.vmem %s2, %s308
      %p310 = scmp.lt.s32.totalorder %s20, 1
      %s311 = scalar_select %p310, %s20, 1
      %s312 = smul.addr %s311, 8
      %s313 = scalar_lea.vmem %s3, %s312
      %p314 = scmp.lt.s32.totalorder %s20, 1
      %s315 = scalar_select %p314, %s20, 1
      %s316 = smul.addr %s315, 8
      %s317 = scalar_lea.vmem %s4, %s316
      // Predicated region
      $region33: #{downsampling_block.2} parent=27 // pred_check
        %p318 = pneg %p97
      $region34: #{downsampling_block.2} parent=27 // pred_check_branch
        %320 = sbr.rel (%p318) target = $region36
      $region35: #{downsampling_block.2} parent=27 // pred_region
        _
      $region36: #{downsampling_block.2} parent=27 // pred_fallthru
        _
      // Predicated region
      $region37: #{downsampling_block.2} parent=27 // pred_check
        %p321 = pneg %p123
      $region38: #{downsampling_block.2} parent=27 // pred_check_branch
        %323 = sbr.rel (%p321) target = $region40
      $region39: #{downsampling_block.2} parent=27 // pred_region
        _
      $region40: #{downsampling_block.2} parent=27 // pred_fallthru
        _
      // Predicated region
      $region41: #{downsampling_block.2} parent=27 // pred_check
        %p324 = pneg %p149
      $region42: #{downsampling_block.2} parent=27 // pred_check_branch
        %326 = sbr.rel (%p324) target = $region44
      $region43: #{downsampling_block.2} parent=27 // pred_region
        _
      $region44: #{downsampling_block.2} parent=27 // pred_fallthru
        _
    $region28: #{downsampling_block.2} parent=5 // pred_fallthru
      _
    %p327 = scmp.le.s32.totalorder 2, %s11
    // Predicated region
    $region45: #{downsampling_block.2} parent=5 // pred_check
      %p328 = pneg %p327
    $region46: #{downsampling_block.2} parent=5 // pred_check_branch
      %330 = sbr.rel (%p328) target = $region48
    $region47: #{downsampling_block.2} parent=5 // pred_region
      %s331 = ssub.s32 %s11, 2
      // Predicated region
      $region49: #{downsampling_block.2} parent=47 // pred_check
        %p332 = pneg %p103
      $region50: #{downsampling_block.2} parent=47 // pred_check_branch
        %334 = sbr.rel (%p332) target = $region52
      $region51: #{downsampling_block.2} parent=47 // pred_region
        %p335 = scmp.lt.s32.totalorder %s22, 1
        %s336 = scalar_select %p335, %s22, 1
        %p337 = scmp.lt.s32.totalorder %s23, 0
        %s338 = scalar_select %p337, %s23, 0
        %s339 = sadd.s32 %s338, %s336
        %s340 = smul.addr %s339, 8
        %s341 = scalar_lea.vmem %s2, %s340
      $region52: #{downsampling_block.2} parent=47 // pred_fallthru
        _
      // Predicated region
      $region53: #{downsampling_block.2} parent=47 // pred_check
        %p342 = pneg %p129
      $region54: #{downsampling_block.2} parent=47 // pred_check_branch
        %344 = sbr.rel (%p342) target = $region56
      $region55: #{downsampling_block.2} parent=47 // pred_region
        %p345 = scmp.lt.s32.totalorder %s22, 1
        %s346 = scalar_select %p345, %s22, 1
        %s347 = smul.addr %s346, 8
        %s348 = scalar_lea.vmem %s3, %s347
      $region56: #{downsampling_block.2} parent=47 // pred_fallthru
        _
      // Predicated region
      $region57: #{downsampling_block.2} parent=47 // pred_check
        %p349 = pneg %p155
      $region58: #{downsampling_block.2} parent=47 // pred_check_branch
        %351 = sbr.rel (%p349) target = $region60
      $region59: #{downsampling_block.2} parent=47 // pred_region
        %p352 = scmp.lt.s32.totalorder %s22, 1
        %s353 = scalar_select %p352, %s22, 1
        %s354 = smul.addr %s353, 8
        %s355 = scalar_lea.vmem %s4, %s354
      $region60: #{downsampling_block.2} parent=47 // pred_fallthru
        _
    $region48: #{downsampling_block.2} parent=5 // pred_fallthru
      _
  $region6: #{downsampling_block.2} parent=0 // loop_footer
    %s15 = sadd.s32 1, %s11
  $region7: #{downsampling_block.2} parent=0 // loop_footer_branch
    %10 = sbr.rel target = $region3
  $region8: #{downsampling_block.2} parent=0 // loop_exit
    _

</llo_original>
